<compile_context>
chip_gen: v5e
topology: v5e:2x2
jax: 0.10.0
libtpu: 0.0.40
codegen_flags: <defaults>
</compile_context>

<pallas_src>
import jax
import jax.numpy as jnp
from jax.experimental import pallas as pl
from jax.experimental.pallas import tpu as pltpu

EPS = 1e-8


def _round_up(x, m):
    return (x + m - 1) // m * m


def _choose_tile(n, tn):
    """Pick a lane-dense row tile.  Returns (tile, padded_n, num_tiles)."""
    tn = max(128, min(_round_up(tn, 128), _round_up(n, 128)))
    num_tiles = -(-n // tn)                       # cdiv
    tile = _round_up(-(-n // num_tiles), 128)     # balance tiles, bound waste
    return tile, num_tiles * tile, num_tiles


def gvp_kernel(s_ref, v_ref, wh_ref, wss_ref, wsv_ref, wsb_ref, whv_ref,
               s_out_ref, v_out_ref):
    # s_ref:   [si, TN]      scalar features, transposed: N on lanes
    # v_ref:   [3,  vi, TN]  vector features, component-major, N on lanes
    # wh:      [h,  vi]
    # wss:     [so, si]      columns of Ws acting on s
    # wsv:     [so, h]       columns of Ws acting on vn
    # wsb:     [so, 1]
    # whv:     [vo, vi]      = Wv @ Wh (folded in the wrapper)
    # s_out:   [so, TN]
    # v_out:   [3,  vo, TN]
    wh = wh_ref[...]
    whv = whv_ref[...]
    v0 = v_ref[0]
    v1 = v_ref[1]
    v2 = v_ref[2]

    # vh_c = Wh @ v_c   -> [h, TN]   (lane-dense MXU pushes, TN columns)
    vh0 = jnp.dot(wh, v0, preferred_element_type=jnp.float32)
    vh1 = jnp.dot(wh, v1, preferred_element_type=jnp.float32)
    vh2 = jnp.dot(wh, v2, preferred_element_type=jnp.float32)

    # vn = sqrt(clamp(sum of squares over the 3 components, eps))   [h, TN]
    vn = jnp.sqrt(jnp.maximum(vh0 * vh0 + vh1 * vh1 + vh2 * vh2, EPS))

    # s'^T = relu( Wss @ s^T + Wsv @ vn + b )   [so, TN]
    s_pre = (jnp.dot(wss_ref[...], s_ref[...], preferred_element_type=jnp.float32)
             + jnp.dot(wsv_ref[...], vn, preferred_element_type=jnp.float32)
             + wsb_ref[...])
    s_out_ref[...] = jnp.maximum(s_pre, 0.0).astype(s_out_ref.dtype)

    # vo_c = (Wv @ Wh) @ v_c  -> [vo, TN]; gate by sigmoid of its own norm
    # (independent of the vh/vn chain thanks to the folded weight)
    vo0 = jnp.dot(whv, v0, preferred_element_type=jnp.float32)
    vo1 = jnp.dot(whv, v1, preferred_element_type=jnp.float32)
    vo2 = jnp.dot(whv, v2, preferred_element_type=jnp.float32)
    vnorm = jnp.sqrt(jnp.maximum(vo0 * vo0 + vo1 * vo1 + vo2 * vo2, EPS))
    gate = jax.nn.sigmoid(vnorm)
    v_out_ref[0] = (vo0 * gate).astype(v_out_ref.dtype)
    v_out_ref[1] = (vo1 * gate).astype(v_out_ref.dtype)
    v_out_ref[2] = (vo2 * gate).astype(v_out_ref.dtype)


def gvp_forward(s, v, wh, ws_w, ws_b, wv, *, tn=4096):
    """s: [N, si], v: [N, vi, 3] (torch layout).
    Returns (s_out [N, so], v_out [N, vo, 3]).

    tn: requested row tile (rounded to a multiple of 128 and balanced across
    the grid).  Larger tiles amortize per-grid-step overhead; VMEM use per
    step is ~ 2 * 4B * tn * (si + so + 3*(vi+vo)) which stays far below the
    scoped-VMEM limit for the default tn at typical GVP widths.
    """
    N, si = s.shape
    vi = v.shape[1]
    h = wh.shape[0]
    so = ws_w.shape[0]
    vo = wv.shape[0]

    tn_eff, n_pad, n_tiles = _choose_tile(N, tn)
    pad = n_pad - N

    # Glue: layout transform + padding + weight prep (plain JAX / XLA).
    sT = jnp.pad(jnp.transpose(s, (1, 0)), ((0, 0), (0, pad)))       # [si, n_pad]
    v_cm = jnp.pad(jnp.transpose(v, (2, 1, 0)),
                   ((0, 0), (0, 0), (0, pad)))                       # [3, vi, n_pad]
    wss = ws_w[:, :si]                                               # [so, si]
    wsv = ws_w[:, si:]                                               # [so, h]
    wsb = ws_b[:, None]                                              # [so, 1]
    whv = wv @ wh                                                    # [vo, vi]

    s_outT, v_outT = pl.pallas_call(
        gvp_kernel,
        out_shape=(
            jax.ShapeDtypeStruct((so, n_pad), jnp.float32),
            jax.ShapeDtypeStruct((3, vo, n_pad), jnp.float32),
        ),
        grid_spec=pltpu.PrefetchScalarGridSpec(
            num_scalar_prefetch=0,
            grid=(n_tiles,),
            in_specs=[
                pl.BlockSpec((si, tn_eff), lambda i: (0, i)),
                pl.BlockSpec((3, vi, tn_eff), lambda i: (0, 0, i)),
                pl.BlockSpec((h, vi), lambda i: (0, 0)),
                pl.BlockSpec((so, si), lambda i: (0, 0)),
                pl.BlockSpec((so, h), lambda i: (0, 0)),
                pl.BlockSpec((so, 1), lambda i: (0, 0)),
                pl.BlockSpec((vo, vi), lambda i: (0, 0)),
            ],
            out_specs=[
                pl.BlockSpec((so, tn_eff), lambda i: (0, i)),
                pl.BlockSpec((3, vo, tn_eff), lambda i: (0, 0, i)),
            ],
        ),
        compiler_params=pltpu.CompilerParams(
            dimension_semantics=("parallel",)),
    )(sT, v_cm, wh, wss, wsv, wsb, whv)

    # Strip padding, transpose back to torch layout.
    s_out = jnp.transpose(s_outT[:, :N], (1, 0))                # [N, so]
    v_out = jnp.transpose(v_outT[:, :, :N], (2, 1, 0))          # [N, vo, 3]
    return s_out, v_out


def gvp_reference(s, v, wh, ws_w, ws_b, wv):
    """Pure-JAX transcription of the PyTorch forward (for verification)."""
    vt = jnp.swapaxes(v, -1, -2)                                # [N, 3, vi]
    vh = vt @ wh.T                                              # [N, 3, h]
    vn = jnp.sqrt(jnp.maximum(jnp.sum(vh * vh, axis=-2), EPS))  # [N, h]
    s_cat = jnp.concatenate([s, vn], axis=-1)
    s_out = s_cat @ ws_w.T + ws_b
    v_out = jnp.swapaxes(vh @ wv.T, -1, -2)                     # [N, vo, 3]
    nrm = jnp.sqrt(jnp.maximum(
        jnp.sum(v_out * v_out, axis=-1, keepdims=True), EPS))
    v_out = v_out * jax.nn.sigmoid(nrm)
    s_out = jax.nn.relu(s_out)
    return s_out, v_out


if __name__ == "__main__":
    # in_dims = (si=16, vi=8), out_dims = (so=16, vo=8), h = max(vi, vo) = 8.
    # N=300 is deliberately NOT a multiple of the tile (exercises padding),
    # tn=128 gives a 3-step grid (exercises the pipeline / parallel axis).
    N, si, vi, so, vo = 300, 16, 8, 16, 8
    h = max(vi, vo)

    key = jax.random.PRNGKey(0)
    ks = jax.random.split(key, 6)
    s = jax.random.normal(ks[0], (N, si), dtype=jnp.float32)
    v = jax.random.normal(ks[1], (N, vi, 3), dtype=jnp.float32)

    # Deterministic synthetic parameters (shapes follow nn.Linear in __init__).
    wh = jax.random.normal(ks[2], (h, vi), dtype=jnp.float32) * 0.2       # Linear(vi, h, bias=False)
    ws_w = jax.random.normal(ks[3], (so, h + si), dtype=jnp.float32) * 0.2  # Linear(h+si, so)
    ws_b = jax.random.normal(ks[4], (so,), dtype=jnp.float32) * 0.1
    wv = jax.random.normal(ks[5], (vo, h), dtype=jnp.float32) * 0.2       # Linear(h, vo, bias=False)

    s_out, v_out = gvp_forward(s, v, wh, ws_w, ws_b, wv, tn=128)
    jax.block_until_ready((s_out, v_out))

    s_ref, v_ref = gvp_reference(s, v, wh, ws_w, ws_b, wv)
    assert jnp.allclose(s_out, s_ref, atol=2e-5, rtol=1e-5), "scalar mismatch"
    assert jnp.allclose(v_out, v_ref, atol=2e-5, rtol=1e-5), "vector mismatch"

    print("KERNEL_OK")
</pallas_src>

<mosaic_0001>
module attributes {stable_mosaic.version = 11 : i64} {
  func.func @gvp_kernel(%arg0: i32, %arg1: memref<16x128xf32, #tpu.memory_space<vmem>>, %arg2: memref<3x8x128xf32, #tpu.memory_space<vmem>>, %arg3: memref<8x8xf32, #tpu.memory_space<vmem>>, %arg4: memref<16x16xf32, #tpu.memory_space<vmem>>, %arg5: memref<16x8xf32, #tpu.memory_space<vmem>>, %arg6: memref<16x1xf32, #tpu.memory_space<vmem>>, %arg7: memref<8x8xf32, #tpu.memory_space<vmem>>, %arg8: memref<16x128xf32, #tpu.memory_space<vmem>>, %arg9: memref<3x8x128xf32, #tpu.memory_space<vmem>>) attributes {dimension_semantics = [#tpu.dimension_semantics<parallel>], iteration_bounds = array<i64: 3>, scalar_prefetch = 0 : i64, scratch_operands = 0 : i64, tpu.core_type = #tpu.core_type<tc>, window_params = [{transform_indices = @transform_0, window_bounds = array<i64: 16, 128>}, {transform_indices = @transform_1, window_bounds = array<i64: 3, 8, 128>}, {pipeline_mode = #tpu.pipeline_mode<synchronous>, transform_indices = @transform_2, window_bounds = array<i64: 8, 8>}, {pipeline_mode = #tpu.pipeline_mode<synchronous>, transform_indices = @transform_3, window_bounds = array<i64: 16, 16>}, {pipeline_mode = #tpu.pipeline_mode<synchronous>, transform_indices = @transform_4, window_bounds = array<i64: 16, 8>}, {pipeline_mode = #tpu.pipeline_mode<synchronous>, transform_indices = @transform_5, window_bounds = array<i64: 16, 1>}, {pipeline_mode = #tpu.pipeline_mode<synchronous>, transform_indices = @transform_6, window_bounds = array<i64: 8, 8>}, {transform_indices = @transform_7, window_bounds = array<i64: 16, 128>}, {transform_indices = @transform_8, window_bounds = array<i64: 3, 8, 128>}]} {
    %c0 = arith.constant 0 : index
    %c0_0 = arith.constant 0 : index
    %0 = vector.load %arg3[%c0, %c0_0] : memref<8x8xf32, #tpu.memory_space<vmem>>, vector<8x8xf32>
    %c0_1 = arith.constant 0 : index
    %c0_2 = arith.constant 0 : index
    %1 = vector.load %arg7[%c0_1, %c0_2] : memref<8x8xf32, #tpu.memory_space<vmem>>, vector<8x8xf32>
    %c0_3 = arith.constant 0 : index
    %c0_4 = arith.constant 0 : index
    %c0_5 = arith.constant 0 : index
    %2 = vector.load %arg2[%c0_3, %c0_4, %c0_5] : memref<3x8x128xf32, #tpu.memory_space<vmem>>, vector<1x8x128xf32>
    %3 = vector.shape_cast %2 : vector<1x8x128xf32> to vector<8x128xf32>
    %c1 = arith.constant 1 : index
    %c0_6 = arith.constant 0 : index
    %c0_7 = arith.constant 0 : index
    %4 = vector.load %arg2[%c1, %c0_6, %c0_7] : memref<3x8x128xf32, #tpu.memory_space<vmem>>, vector<1x8x128xf32>
    %5 = vector.shape_cast %4 : vector<1x8x128xf32> to vector<8x128xf32>
    %c2 = arith.constant 2 : index
    %c0_8 = arith.constant 0 : index
    %c0_9 = arith.constant 0 : index
    %6 = vector.load %arg2[%c2, %c0_8, %c0_9] : memref<3x8x128xf32, #tpu.memory_space<vmem>>, vector<1x8x128xf32>
    %7 = vector.shape_cast %6 : vector<1x8x128xf32> to vector<8x128xf32>
    %cst = arith.constant dense<0.000000e+00> : vector<8x128xf32>
    %8 = tpu.matmul %0, %3, %cst {dimension_numbers = #tpu.dot_dimension_numbers<[1], [0], [0], [1], [0, 0, 1, 1], [], []>} : vector<8x8xf32>, vector<8x128xf32>, vector<8x128xf32> -> vector<8x128xf32>
    %cst_10 = arith.constant dense<0.000000e+00> : vector<8x128xf32>
    %9 = tpu.matmul %0, %5, %cst_10 {dimension_numbers = #tpu.dot_dimension_numbers<[1], [0], [0], [1], [0, 0, 1, 1], [], []>} : vector<8x8xf32>, vector<8x128xf32>, vector<8x128xf32> -> vector<8x128xf32>
    %cst_11 = arith.constant dense<0.000000e+00> : vector<8x128xf32>
    %10 = tpu.matmul %0, %7, %cst_11 {dimension_numbers = #tpu.dot_dimension_numbers<[1], [0], [0], [1], [0, 0, 1, 1], [], []>} : vector<8x8xf32>, vector<8x128xf32>, vector<8x128xf32> -> vector<8x128xf32>
    %11 = arith.mulf %8, %8 : vector<8x128xf32>
    %12 = arith.mulf %9, %9 : vector<8x128xf32>
    %13 = arith.addf %11, %12 : vector<8x128xf32>
    %14 = arith.mulf %10, %10 : vector<8x128xf32>
    %15 = arith.addf %13, %14 : vector<8x128xf32>
    %cst_12 = arith.constant 9.99999993E-9 : f32
    %16 = vector.broadcast %cst_12 : f32 to vector<8x128xf32>
    %17 = arith.maximumf %15, %16 : vector<8x128xf32>
    %18 = math.sqrt %17 : vector<8x128xf32>
    %c0_13 = arith.constant 0 : index
    %c0_14 = arith.constant 0 : index
    %19 = vector.load %arg4[%c0_13, %c0_14] : memref<16x16xf32, #tpu.memory_space<vmem>>, vector<16x16xf32>
    %c0_15 = arith.constant 0 : index
    %c0_16 = arith.constant 0 : index
    %20 = vector.load %arg1[%c0_15, %c0_16] : memref<16x128xf32, #tpu.memory_space<vmem>>, vector<16x128xf32>
    %cst_17 = arith.constant dense<0.000000e+00> : vector<16x128xf32>
    %21 = tpu.matmul %19, %20, %cst_17 {dimension_numbers = #tpu.dot_dimension_numbers<[1], [0], [0], [1], [0, 0, 1, 1], [], []>} : vector<16x16xf32>, vector<16x128xf32>, vector<16x128xf32> -> vector<16x128xf32>
    %c0_18 = arith.constant 0 : index
    %c0_19 = arith.constant 0 : index
    %22 = vector.load %arg5[%c0_18, %c0_19] : memref<16x8xf32, #tpu.memory_space<vmem>>, vector<16x8xf32>
    %cst_20 = arith.constant dense<0.000000e+00> : vector<16x128xf32>
    %23 = tpu.matmul %22, %18, %cst_20 {dimension_numbers = #tpu.dot_dimension_numbers<[1], [0], [0], [1], [0, 0, 1, 1], [], []>} : vector<16x8xf32>, vector<8x128xf32>, vector<16x128xf32> -> vector<16x128xf32>
    %24 = arith.addf %21, %23 : vector<16x128xf32>
    %c0_21 = arith.constant 0 : index
    %c0_22 = arith.constant 0 : index
    %25 = vector.load %arg6[%c0_21, %c0_22] : memref<16x1xf32, #tpu.memory_space<vmem>>, vector<16x1xf32>
    %26 = vector.broadcast %25 : vector<16x1xf32> to vector<16x128xf32>
    %27 = arith.addf %24, %26 : vector<16x128xf32>
    %cst_23 = arith.constant 0.000000e+00 : f32
    %28 = vector.broadcast %cst_23 : f32 to vector<16x128xf32>
    %29 = arith.maximumf %27, %28 : vector<16x128xf32>
    %c0_24 = arith.constant 0 : index
    %c0_25 = arith.constant 0 : index
    %30 = vector.load %arg8[%c0_24, %c0_25] : memref<16x128xf32, #tpu.memory_space<vmem>>, vector<16x128xf32>
    tpu.vector_store %arg8[%c0_24, %c0_25], %29 {strides = array<i32>} : memref<16x128xf32, #tpu.memory_space<vmem>>, vector<16x128xf32>,
    %cst_26 = arith.constant dense<0.000000e+00> : vector<8x128xf32>
    %31 = tpu.matmul %1, %3, %cst_26 {dimension_numbers = #tpu.dot_dimension_numbers<[1], [0], [0], [1], [0, 0, 1, 1], [], []>} : vector<8x8xf32>, vector<8x128xf32>, vector<8x128xf32> -> vector<8x128xf32>
    %cst_27 = arith.constant dense<0.000000e+00> : vector<8x128xf32>
    %32 = tpu.matmul %1, %5, %cst_27 {dimension_numbers = #tpu.dot_dimension_numbers<[1], [0], [0], [1], [0, 0, 1, 1], [], []>} : vector<8x8xf32>, vector<8x128xf32>, vector<8x128xf32> -> vector<8x128xf32>
    %cst_28 = arith.constant dense<0.000000e+00> : vector<8x128xf32>
    %33 = tpu.matmul %1, %7, %cst_28 {dimension_numbers = #tpu.dot_dimension_numbers<[1], [0], [0], [1], [0, 0, 1, 1], [], []>} : vector<8x8xf32>, vector<8x128xf32>, vector<8x128xf32> -> vector<8x128xf32>
    %34 = arith.mulf %31, %31 : vector<8x128xf32>
    %35 = arith.mulf %32, %32 : vector<8x128xf32>
    %36 = arith.addf %34, %35 : vector<8x128xf32>
    %37 = arith.mulf %33, %33 : vector<8x128xf32>
    %38 = arith.addf %36, %37 : vector<8x128xf32>
    %cst_29 = arith.constant 9.99999993E-9 : f32
    %39 = vector.broadcast %cst_29 : f32 to vector<8x128xf32>
    %40 = arith.maximumf %38, %39 : vector<8x128xf32>
    %41 = math.sqrt %40 : vector<8x128xf32>
    %42 = arith.negf %41 : vector<8x128xf32>
    %43 = math.exp %42 : vector<8x128xf32>
    %cst_30 = arith.constant 1.000000e+00 : f32
    %44 = vector.broadcast %cst_30 : f32 to vector<8x128xf32>
    %45 = arith.addf %44, %43 : vector<8x128xf32>
    %46 = arith.divf %44, %45 : vector<8x128xf32>
    %47 = arith.mulf %31, %46 : vector<8x128xf32>
    %c0_31 = arith.constant 0 : index
    %c0_32 = arith.constant 0 : index
    %c0_33 = arith.constant 0 : index
    %48 = vector.load %arg9[%c0_31, %c0_32, %c0_33] : memref<3x8x128xf32, #tpu.memory_space<vmem>>, vector<1x8x128xf32>
    %49 = vector.shape_cast %48 : vector<1x8x128xf32> to vector<8x128xf32>
    %50 = vector.shape_cast %47 : vector<8x128xf32> to vector<1x8x128xf32>
    tpu.vector_store %arg9[%c0_31, %c0_32, %c0_33], %50 {strides = array<i32>} : memref<3x8x128xf32, #tpu.memory_space<vmem>>, vector<1x8x128xf32>,
    %51 = arith.mulf %32, %46 : vector<8x128xf32>
    %c1_34 = arith.constant 1 : index
    %c0_35 = arith.constant 0 : index
    %c0_36 = arith.constant 0 : index
    %52 = vector.load %arg9[%c1_34, %c0_35, %c0_36] : memref<3x8x128xf32, #tpu.memory_space<vmem>>, vector<1x8x128xf32>
    %53 = vector.shape_cast %52 : vector<1x8x128xf32> to vector<8x128xf32>
    %54 = vector.shape_cast %51 : vector<8x128xf32> to vector<1x8x128xf32>
    tpu.vector_store %arg9[%c1_34, %c0_35, %c0_36], %54 {strides = array<i32>} : memref<3x8x128xf32, #tpu.memory_space<vmem>>, vector<1x8x128xf32>,
    %55 = arith.mulf %33, %46 : vector<8x128xf32>
    %c2_37 = arith.constant 2 : index
    %c0_38 = arith.constant 0 : index
    %c0_39 = arith.constant 0 : index
    %56 = vector.load %arg9[%c2_37, %c0_38, %c0_39] : memref<3x8x128xf32, #tpu.memory_space<vmem>>, vector<1x8x128xf32>
    %57 = vector.shape_cast %56 : vector<1x8x128xf32> to vector<8x128xf32>
    %58 = vector.shape_cast %55 : vector<8x128xf32> to vector<1x8x128xf32>
    tpu.vector_store %arg9[%c2_37, %c0_38, %c0_39], %58 {strides = array<i32>} : memref<3x8x128xf32, #tpu.memory_space<vmem>>, vector<1x8x128xf32>,
    return
  }
  func.func @transform_0(%arg0: i32) -> (i32, i32) {
    %c0_i32 = arith.constant 0 : i32
    %c0_i32_0 = arith.constant 0 : i32
    return %c0_i32, %arg0 : i32, i32
  }
  func.func @transform_1(%arg0: i32) -> (i32, i32, i32) {
    %c0_i32 = arith.constant 0 : i32
    %c0_i32_0 = arith.constant 0 : i32
    %c0_i32_1 = arith.constant 0 : i32
    return %c0_i32, %c0_i32_0, %arg0 : i32, i32, i32
  }
  func.func @transform_2(%arg0: i32) -> (i32, i32) {
    %c0_i32 = arith.constant 0 : i32
    %c0_i32_0 = arith.constant 0 : i32
    %c0_i32_1 = arith.constant 0 : i32
    return %c0_i32, %c0_i32_0 : i32, i32
  }
  func.func @transform_3(%arg0: i32) -> (i32, i32) {
    %c0_i32 = arith.constant 0 : i32
    %c0_i32_0 = arith.constant 0 : i32
    %c0_i32_1 = arith.constant 0 : i32
    return %c0_i32, %c0_i32_0 : i32, i32
  }
  func.func @transform_4(%arg0: i32) -> (i32, i32) {
    %c0_i32 = arith.constant 0 : i32
    %c0_i32_0 = arith.constant 0 : i32
    %c0_i32_1 = arith.constant 0 : i32
    return %c0_i32, %c0_i32_0 : i32, i32
  }
  func.func @transform_5(%arg0: i32) -> (i32, i32) {
    %c0_i32 = arith.constant 0 : i32
    %c0_i32_0 = arith.constant 0 : i32
    %c0_i32_1 = arith.constant 0 : i32
    return %c0_i32, %c0_i32_0 : i32, i32
  }
  func.func @transform_6(%arg0: i32) -> (i32, i32) {
    %c0_i32 = arith.constant 0 : i32
    %c0_i32_0 = arith.constant 0 : i32
    %c0_i32_1 = arith.constant 0 : i32
    return %c0_i32, %c0_i32_0 : i32, i32
  }
  func.func @transform_7(%arg0: i32) -> (i32, i32) {
    %c0_i32 = arith.constant 0 : i32
    %c0_i32_0 = arith.constant 0 : i32
    return %c0_i32, %arg0 : i32, i32
  }
  func.func @transform_8(%arg0: i32) -> (i32, i32, i32) {
    %c0_i32 = arith.constant 0 : i32
    %c0_i32_0 = arith.constant 0 : i32
    %c0_i32_1 = arith.constant 0 : i32
    return %c0_i32, %c0_i32_0, %arg0 : i32, i32, i32
  }
}

</mosaic_0001>

<llo_original>
// kernel: tpu_custom_call.1
$region0: #{tpu_custom_call.1}
  #allocation0 [shape = 'u32[]', space=smem, size = 0x4, offset = 0x4, fixed_abs, tag = 'smem constant byte address 0x4 - core index']
  #allocation1 [shape = 'u32[72,128]{1,0:T(1,128)}', space=vmem, size = 0x9000, scoped, tag = 'internal scratch']
  %s0 = inlined_call_operand.hbm [shape: f32[16,384], index: 0, kind: input, shape index: {}]
  %s1 = inlined_call_operand.hbm [shape: f32[3,8,384], index: 1, kind: input, shape index: {}]
  %s2 = inlined_call_operand.vmem [shape: f32[8,8], index: 2, kind: input, shape index: {}]
  %s3 = inlined_call_operand.vmem [shape: f32[16,16], index: 3, kind: input, shape index: {}]
  %s4 = inlined_call_operand.vmem [shape: f32[16,8], index: 4, kind: input, shape index: {}]
  %s5 = inlined_call_operand.vmem [shape: f32[16,1], index: 5, kind: input, shape index: {}]
  %s6 = inlined_call_operand.vmem [shape: f32[8,8], index: 6, kind: input, shape index: {}]
  %s7 = inlined_call_operand.hbm [shape: f32[16,384], index: 7, kind: output, shape index: {0}]
  %s8 = inlined_call_operand.hbm [shape: f32[3,8,384], index: 8, kind: output, shape index: {1}]
  %9 = xla_tuple %s7, %s8
  %s10 = sld [smem:[#allocation0]]
  $region77: #{tpu_custom_call.1} parent=0
    _
  %s12 = ssub.s32 1, %s10
  %s13 = scalar_select 0, %s12, %s10
  $region1: #{tpu_custom_call.1} parent=0
    #allocation2 [shape = 'u8[16384]{0}', space=vmem, size = 0x4000, scoped, tag = 'input window, operand 0']
    #allocation3 [shape = 's32[2]{0}', space=sflag, size = 0x8, scoped, tag = 'scoped memory for tpu_custom_call.1']
    #allocation4 [shape = 's32[2]{0}', space=sflag, size = 0x8, scoped, tag = 'scoped memory for tpu_custom_call.1']
    #allocation5 [shape = 'u8[24576]{0}', space=vmem, size = 0x6000, scoped, tag = 'input window, operand 1']
    #allocation6 [shape = 's32[2]{0}', space=sflag, size = 0x8, scoped, tag = 'scoped memory for tpu_custom_call.1']
    #allocation7 [shape = 'u8[16384]{0}', space=vmem, size = 0x4000, scoped, tag = 'output window, operand 0']
    #allocation8 [shape = 'u8[24576]{0}', space=vmem, size = 0x6000, scoped, tag = 'output window, operand 1']
    #allocation9 [shape = 's32[2]{0}', space=sflag, size = 0x8, scoped, tag = 'scoped memory for tpu_custom_call.1']
    %14 = vsyncpa [#allocation3], 0
    %s15 = scalar_lea.sflag [#allocation3], 1
    %16 = vsyncpa %s15, 0
    %17 = vsyncpa [#allocation6], 0
    %s18 = scalar_lea.sflag [#allocation6], 1
    %19 = vsyncpa %s18, 0
    %20 = vsyncpa [#allocation4], 0
    %s21 = scalar_lea.sflag [#allocation4], 1
    %22 = vsyncpa %s21, 0
    %23 = vsyncpa [#allocation9], 0
    %s24 = scalar_lea.sflag [#allocation9], 1
    %25 = vsyncpa %s24, 0
    loop: start=0, step=1, limit=5
    $region2: #{tpu_custom_call.1} parent=1 // loop_pre_header
      _
    $region3: #{tpu_custom_call.1} parent=1 // loop_header
      %s27 = sphi 0, %s31
      %p28 = scmp.ge.s32.totalorder %s27, 5
      %s37 = sphi 0, %s39
      %s40 = sphi 0, %s37
      %s41 = sphi 0, %s40
      %s57 = sphi 0, %s41
      %s63 = sphi 0, %s65
      %s66 = sphi 0, %s63
      %s67 = sphi 0, %s66
      %s83 = sphi 0, %s67
      %s87 = sphi 0, %s87
      %s89 = sphi 0, %s87
      %s90 = sphi 0, %s89
      %s104 = sphi 0, %s90
      %s108 = sphi 0, %s108
      %s110 = sphi 0, %s108
      %s111 = sphi 0, %s110
      %s125 = sphi 0, %s111
      %s129 = sphi 0, %s129
      %s131 = sphi 0, %s129
      %s132 = sphi 0, %s131
      %s146 = sphi 0, %s132
      %s150 = sphi 0, %s150
      %s152 = sphi 0, %s150
      %s153 = sphi 0, %s152
      %s167 = sphi 0, %s153
      %s171 = sphi 0, %s171
      %s173 = sphi 0, %s171
      %s174 = sphi 0, %s173
      %s188 = sphi 0, %s174
      %s194 = sphi 0, %s196
      %s197 = sphi 0, %s194
      %s198 = sphi 0, %s197
      %s214 = sphi 0, %s198
      %s220 = sphi 0, %s222
      %s223 = sphi 0, %s220
      %s224 = sphi 0, %s223
      %s240 = sphi 0, %s224
    $region4: #{tpu_custom_call.1} parent=1 // loop_header_branch
      %30 = sbr.rel (%p28) target = $region8
    $region5: #{tpu_custom_call.1} parent=1 // loop_body
      %s32 = ssub.s32 %s27, 1
      %s33 = ssub.s32 %s27, 2
      %s34 = sadd.s32 %s27, 1
      %s35 = ssub.s32 %s27, %s34
      %p36 = scmp.eq.s32.totalorder %s35, 0
      %s38 = sadd.s32 %s37, 1
      %s39 = scalar_select %p36, %s37, %s38
      %p42 = pneg %p36
      %p43 = scmp.eq.s32.totalorder %s27, 2
      %p44 = por %p42, %p43
      %p45 = scmp.ne.s32.totalorder %s37, %s40
      %p46 = scmp.eq.s32.totalorder %s27, 0
      %p47 = por %p45, %p46
      %p48 = scmp.ne.s32.totalorder %s37, %s40
      %p49 = scmp.eq.s32.totalorder %s32, 2
      %p50 = por %p48, %p49
      %p51 = scmp.ne.s32.totalorder %s40, %s41
      %p52 = scmp.eq.s32.totalorder %s32, 0
      %p53 = por %p51, %p52
      %p54 = scmp.ne.s32.totalorder %s40, %s41
      %p55 = scmp.eq.s32.totalorder %s33, 2
      %p56 = por %p54, %p55
      %p58 = scmp.ne.s32.totalorder %s41, %s57
      %p59 = scmp.eq.s32.totalorder %s33, 0
      %p60 = por %p58, %p59
      %s61 = ssub.s32 %s27, %s34
      %p62 = scmp.eq.s32.totalorder %s61, 0
      %s64 = sadd.s32 %s63, 1
      %s65 = scalar_select %p62, %s63, %s64
      %p68 = pneg %p62
      %p69 = scmp.eq.s32.totalorder %s27, 2
      %p70 = por %p68, %p69
      %p71 = scmp.ne.s32.totalorder %s63, %s66
      %p72 = scmp.eq.s32.totalorder %s27, 0
      %p73 = por %p71, %p72
      %p74 = scmp.ne.s32.totalorder %s63, %s66
      %p75 = scmp.eq.s32.totalorder %s32, 2
      %p76 = por %p74, %p75
      %p77 = scmp.ne.s32.totalorder %s66, %s67
      %p78 = scmp.eq.s32.totalorder %s32, 0
      %p79 = por %p77, %p78
      %p80 = scmp.ne.s32.totalorder %s66, %s67
      %p81 = scmp.eq.s32.totalorder %s33, 2
      %p82 = por %p80, %p81
      %p84 = scmp.ne.s32.totalorder %s67, %s83
      %p85 = scmp.eq.s32.totalorder %s33, 0
      %p86 = por %p84, %p85
      %s88 = sadd.s32 %s87, 1
      %p91 = scmp.eq.s32.totalorder %s27, 2
      %p92 = scmp.ne.s32.totalorder %s87, %s89
      %p93 = scmp.eq.s32.totalorder %s27, 0
      %p94 = por %p92, %p93
      %p95 = scmp.ne.s32.totalorder %s87, %s89
      %p96 = scmp.eq.s32.totalorder %s32, 2
      %p97 = por %p95, %p96
      %p98 = scmp.ne.s32.totalorder %s89, %s90
      %p99 = scmp.eq.s32.totalorder %s32, 0
      %p100 = por %p98, %p99
      %p101 = scmp.ne.s32.totalorder %s89, %s90
      %p102 = scmp.eq.s32.totalorder %s33, 2
      %p103 = por %p101, %p102
      %p105 = scmp.ne.s32.totalorder %s90, %s104
      %p106 = scmp.eq.s32.totalorder %s33, 0
      %p107 = por %p105, %p106
      %s109 = sadd.s32 %s108, 1
      %p112 = scmp.eq.s32.totalorder %s27, 2
      %p113 = scmp.ne.s32.totalorder %s108, %s110
      %p114 = scmp.eq.s32.totalorder %s27, 0
      %p115 = por %p113, %p114
      %p116 = scmp.ne.s32.totalorder %s108, %s110
      %p117 = scmp.eq.s32.totalorder %s32, 2
      %p118 = por %p116, %p117
      %p119 = scmp.ne.s32.totalorder %s110, %s111
      %p120 = scmp.eq.s32.totalorder %s32, 0
      %p121 = por %p119, %p120
      %p122 = scmp.ne.s32.totalorder %s110, %s111
      %p123 = scmp.eq.s32.totalorder %s33, 2
      %p124 = por %p122, %p123
      %p126 = scmp.ne.s32.totalorder %s111, %s125
      %p127 = scmp.eq.s32.totalorder %s33, 0
      %p128 = por %p126, %p127
      %s130 = sadd.s32 %s129, 1
      %p133 = scmp.eq.s32.totalorder %s27, 2
      %p134 = scmp.ne.s32.totalorder %s129, %s131
      %p135 = scmp.eq.s32.totalorder %s27, 0
      %p136 = por %p134, %p135
      %p137 = scmp.ne.s32.totalorder %s129, %s131
      %p138 = scmp.eq.s32.totalorder %s32, 2
      %p139 = por %p137, %p138
      %p140 = scmp.ne.s32.totalorder %s131, %s132
      %p141 = scmp.eq.s32.totalorder %s32, 0
      %p142 = por %p140, %p141
      %p143 = scmp.ne.s32.totalorder %s131, %s132
      %p144 = scmp.eq.s32.totalorder %s33, 2
      %p145 = por %p143, %p144
      %p147 = scmp.ne.s32.totalorder %s132, %s146
      %p148 = scmp.eq.s32.totalorder %s33, 0
      %p149 = por %p147, %p148
      %s151 = sadd.s32 %s150, 1
      %p154 = scmp.eq.s32.totalorder %s27, 2
      %p155 = scmp.ne.s32.totalorder %s150, %s152
      %p156 = scmp.eq.s32.totalorder %s27, 0
      %p157 = por %p155, %p156
      %p158 = scmp.ne.s32.totalorder %s150, %s152
      %p159 = scmp.eq.s32.totalorder %s32, 2
      %p160 = por %p158, %p159
      %p161 = scmp.ne.s32.totalorder %s152, %s153
      %p162 = scmp.eq.s32.totalorder %s32, 0
      %p163 = por %p161, %p162
      %p164 = scmp.ne.s32.totalorder %s152, %s153
      %p165 = scmp.eq.s32.totalorder %s33, 2
      %p166 = por %p164, %p165
      %p168 = scmp.ne.s32.totalorder %s153, %s167
      %p169 = scmp.eq.s32.totalorder %s33, 0
      %p170 = por %p168, %p169
      %s172 = sadd.s32 %s171, 1
      %p175 = scmp.eq.s32.totalorder %s27, 2
      %p176 = scmp.ne.s32.totalorder %s171, %s173
      %p177 = scmp.eq.s32.totalorder %s27, 0
      %p178 = por %p176, %p177
      %p179 = scmp.ne.s32.totalorder %s171, %s173
      %p180 = scmp.eq.s32.totalorder %s32, 2
      %p181 = por %p179, %p180
      %p182 = scmp.ne.s32.totalorder %s173, %s174
      %p183 = scmp.eq.s32.totalorder %s32, 0
      %p184 = por %p182, %p183
      %p185 = scmp.ne.s32.totalorder %s173, %s174
      %p186 = scmp.eq.s32.totalorder %s33, 2
      %p187 = por %p185, %p186
      %p189 = scmp.ne.s32.totalorder %s174, %s188
      %p190 = scmp.eq.s32.totalorder %s33, 0
      %p191 = por %p189, %p190
      %s192 = ssub.s32 %s27, %s34
      %p193 = scmp.eq.s32.totalorder %s192, 0
      %s195 = sadd.s32 %s194, 1
      %s196 = scalar_select %p193, %s194, %s195
      %p199 = pneg %p193
      %p200 = scmp.eq.s32.totalorder %s27, 2
      %p201 = por %p199, %p200
      %p202 = scmp.ne.s32.totalorder %s194, %s197
      %p203 = scmp.eq.s32.totalorder %s27, 0
      %p204 = por %p202, %p203
      %p205 = scmp.ne.s32.totalorder %s194, %s197
      %p206 = scmp.eq.s32.totalorder %s32, 2
      %p207 = por %p205, %p206
      %p208 = scmp.ne.s32.totalorder %s197, %s198
      %p209 = scmp.eq.s32.totalorder %s32, 0
      %p210 = por %p208, %p209
      %p211 = scmp.ne.s32.totalorder %s197, %s198
      %p212 = scmp.eq.s32.totalorder %s33, 2
      %p213 = por %p211, %p212
      %p215 = scmp.ne.s32.totalorder %s198, %s214
      %p216 = scmp.eq.s32.totalorder %s33, 0
      %p217 = por %p215, %p216
      %s218 = ssub.s32 %s27, %s34
      %p219 = scmp.eq.s32.totalorder %s218, 0
      %s221 = sadd.s32 %s220, 1
      %s222 = scalar_select %p219, %s220, %s221
      %p225 = pneg %p219
      %p226 = scmp.eq.s32.totalorder %s27, 2
      %p227 = por %p225, %p226
      %p228 = scmp.ne.s32.totalorder %s220, %s223
      %p229 = scmp.eq.s32.totalorder %s27, 0
      %p230 = por %p228, %p229
      %p231 = scmp.ne.s32.totalorder %s220, %s223
      %p232 = scmp.eq.s32.totalorder %s32, 2
      %p233 = por %p231, %p232
      %p234 = scmp.ne.s32.totalorder %s223, %s224
      %p235 = scmp.eq.s32.totalorder %s32, 0
      %p236 = por %p234, %p235
      %p237 = scmp.ne.s32.totalorder %s223, %s224
      %p238 = scmp.eq.s32.totalorder %s33, 2
      %p239 = por %p237, %p238
      %p241 = scmp.ne.s32.totalorder %s224, %s240
      %p242 = scmp.eq.s32.totalorder %s33, 0
      %p243 = por %p241, %p242
      %p244 = scmp.le.s32.totalorder 1, %s27
      %p245 = scmp.lt.s32.totalorder %s27, 4
      %p246 = pnand %p244, %p245
      %p247 = pneg %p246
      // Predicated region
      $region9: #{tpu_custom_call.1} parent=5 // pred_check
        _
      $region10: #{tpu_custom_call.1} parent=5 // pred_check_branch
        %249 = sbr.rel (%p246) target = $region12
      $region11: #{tpu_custom_call.1} parent=5 // pred_region
        %s250 = ssub.s32 %s27, 1
        // Predicated region
        $region13: #{tpu_custom_call.1} parent=11 // pred_check
          %p251 = pneg %p100
        $region14: #{tpu_custom_call.1} parent=11 // pred_check_branch
          %253 = sbr.rel (%p251) target = $region16
        $region15: #{tpu_custom_call.1} parent=11 // pred_region
          _
        $region16: #{tpu_custom_call.1} parent=11 // pred_fallthru
          _
        // Predicated region
        $region17: #{tpu_custom_call.1} parent=11 // pred_check
          %p254 = pneg %p121
        $region18: #{tpu_custom_call.1} parent=11 // pred_check_branch
          %256 = sbr.rel (%p254) target = $region20
        $region19: #{tpu_custom_call.1} parent=11 // pred_region
          _
        $region20: #{tpu_custom_call.1} parent=11 // pred_fallthru
          _
        // Predicated region
        $region21: #{tpu_custom_call.1} parent=11 // pred_check
          %p257 = pneg %p142
        $region22: #{tpu_custom_call.1} parent=11 // pred_check_branch
          %259 = sbr.rel (%p257) target = $region24
        $region23: #{tpu_custom_call.1} parent=11 // pred_region
          _
        $region24: #{tpu_custom_call.1} parent=11 // pred_fallthru
          _
        // Predicated region
        $region25: #{tpu_custom_call.1} parent=11 // pred_check
          %p260 = pneg %p163
        $region26: #{tpu_custom_call.1} parent=11 // pred_check_branch
          %262 = sbr.rel (%p260) target = $region28
        $region27: #{tpu_custom_call.1} parent=11 // pred_region
          _
        $region28: #{tpu_custom_call.1} parent=11 // pred_fallthru
          _
        // Predicated region
        $region29: #{tpu_custom_call.1} parent=11 // pred_check
          %p263 = pneg %p184
        $region30: #{tpu_custom_call.1} parent=11 // pred_check_branch
          %265 = sbr.rel (%p263) target = $region32
        $region31: #{tpu_custom_call.1} parent=11 // pred_region
          _
        $region32: #{tpu_custom_call.1} parent=11 // pred_fallthru
          _
      $region12: #{tpu_custom_call.1} parent=5 // pred_fallthru
        _
      %p266 = scmp.lt.s32.totalorder %s27, 3
      // Predicated region
      $region33: #{tpu_custom_call.1} parent=5 // pred_check
        %p267 = pneg %p266
      $region34: #{tpu_custom_call.1} parent=5 // pred_check_branch
        %269 = sbr.rel (%p267) target = $region36
      $region35: #{tpu_custom_call.1} parent=5 // pred_region
        // Predicated region
        $region37: #{tpu_custom_call.1} parent=35 // pred_check
          %p270 = pneg %p47
        $region38: #{tpu_custom_call.1} parent=35 // pred_check_branch
          %272 = sbr.rel (%p270) target = $region40
        $region39: #{tpu_custom_call.1} parent=35 // pred_region
          %s273 = sand.u32 %s37, 1
          %s274 = scalar_lea.sflag [#allocation3], %s273
          %s275 = sand.u32 %s37, 1
          %s276 = smul.addr %s275, 16
          %s277 = scalar_lea.vmem [#allocation2], %s276
          %279 = vsyncadd %s274, 0
          %s280 = smul.addr %s27, 8
          %s281 = scalar_lea.hbm %s0, %s280
          %s282 = sshll.u32 %s281, 4
          %s283 = int_to_ptr.hbm [resolvable:$true] %s282
          %s284 = sshll.u32 %s277, 4
          %s285 = int_to_ptr.vmem [resolvable:$true] %s284
          %290 = dma.hbm_to_vmem [thread:$0]  %s283, 256, %s285, %s274, 384, 128, 8
        $region40: #{tpu_custom_call.1} parent=35 // pred_fallthru
          _
        // Predicated region
        $region41: #{tpu_custom_call.1} parent=35 // pred_check
          %p291 = pneg %p73
        $region42: #{tpu_custom_call.1} parent=35 // pred_check_branch
          %293 = sbr.rel (%p291) target = $region44
        $region43: #{tpu_custom_call.1} parent=35 // pred_region
          %s294 = sand.u32 %s63, 1
          %s295 = scalar_lea.sflag [#allocation6], %s294
          %s296 = sand.u32 %s63, 1
          %s297 = smul.addr %s296, 24
          %s298 = scalar_lea.vmem [#allocation5], %s297
          %300 = vsyncadd %s295, 0
          %s301 = smul.addr %s27, 8
          %s302 = scalar_lea.hbm %s1, %s301
          %s303 = sshll.u32 %s302, 4
          %s304 = int_to_ptr.hbm [resolvable:$true] %s303
          %s305 = sshll.u32 %s298, 4
          %s306 = int_to_ptr.vmem [resolvable:$true] %s305
          %311 = dma.hbm_to_vmem [thread:$0]  %s304, 384, %s306, %s295, 384, 128, 8
        $region44: #{tpu_custom_call.1} parent=35 // pred_fallthru
          _
      $region36: #{tpu_custom_call.1} parent=5 // pred_fallthru
        _
      %p312 = scmp.le.s32.totalorder 1, %s27
      %p313 = scmp.lt.s32.totalorder %s27, 4
      %p314 = pnand %p312, %p313
      %p315 = pneg %p314
      // Predicated region
      $region45: #{tpu_custom_call.1} parent=5 // pred_check
        _
      $region46: #{tpu_custom_call.1} parent=5 // pred_check_branch
        %317 = sbr.rel (%p314) target = $region48
      $region47: #{tpu_custom_call.1} parent=5 // pred_region
        %s318 = ssub.s32 %s27, 1
        %s319 = sand.u32 %s40, 1
        %s320 = scalar_lea.sflag [#allocation3], %s319
        %s321 = sand.u32 %s40, 1
        %s322 = smul.addr %s321, 16
        %s323 = scalar_lea.vmem [#allocation2], %s322
        // Predicated region
        $region49: #{tpu_custom_call.1} parent=47 // pred_check
          %p324 = pneg %p53
        $region50: #{tpu_custom_call.1} parent=47 // pred_check_branch
          %326 = sbr.rel (%p324) target = $region52
        $region51: #{tpu_custom_call.1} parent=47 // pred_region
          %328 = dma.done %s320, 256
        $region52: #{tpu_custom_call.1} parent=47 // pred_fallthru
          _
        %s329 = sand.u32 %s66, 1
        %s330 = scalar_lea.sflag [#allocation6], %s329
        %s331 = sand.u32 %s66, 1
        %s332 = smul.addr %s331, 24
        %s333 = scalar_lea.vmem [#allocation5], %s332
        // Predicated region
        $region53: #{tpu_custom_call.1} parent=47 // pred_check
          %p334 = pneg %p79
        $region54: #{tpu_custom_call.1} parent=47 // pred_check_branch
          %336 = sbr.rel (%p334) target = $region56
        $region55: #{tpu_custom_call.1} parent=47 // pred_region
          %338 = dma.done %s330, 384
        $region56: #{tpu_custom_call.1} parent=47 // pred_fallthru
          _
        %s339 = sand.u32 %s40, 1
        %s340 = scalar_lea.sflag [#allocation3], %s339
        %s341 = sand.u32 %s40, 1
        %s342 = smul.addr %s341, 16
        %s343 = scalar_lea.vmem [#allocation2], %s342
        %p344 = pneg %p53
        %p345 = pneg %p50
        %s346 = sand.u32 %s66, 1
        %s347 = scalar_lea.sflag [#allocation6], %s346
        %s348 = sand.u32 %s66, 1
        %s349 = smul.addr %s348, 24
        %s350 = scalar_lea.vmem [#allocation5], %s349
        %p351 = pneg %p79
        %p352 = pneg %p76
        %p353 = pneg %p100
        %p354 = pneg %p97
        %p355 = pneg %p121
        %p356 = pneg %p118
        %p357 = pneg %p142
        %p358 = pneg %p139
        %p359 = pneg %p163
        %p360 = pneg %p160
        %p361 = pneg %p184
        %p362 = pneg %p181
        %p363 = pneg %p210
        %p364 = pneg %p207
        %s365 = sand.u32 %s197, 1
        %s366 = scalar_lea.sflag [#allocation4], %s365
        %s367 = sand.u32 %s197, 1
        %s368 = smul.addr %s367, 16
        %s369 = scalar_lea.vmem [#allocation7], %s368
        %p370 = pneg %p236
        %p371 = pneg %p233
        %s372 = sand.u32 %s223, 1
        %s373 = scalar_lea.sflag [#allocation9], %s372
        %s374 = sand.u32 %s223, 1
        %s375 = smul.addr %s374, 24
        %s376 = scalar_lea.vmem [#allocation8], %s375
        %v377 = vld [vmem:[%s2] sm:$0xff]
        %v378 = vld [vmem:[%s6] sm:$0xff]
        %v379 = vld [vmem:[%s333] sm:$0xff]
        %s380 = scalar_lea.vmem %s333, 8 [#allocation5]
        %v381 = vld [vmem:[%s380] sm:$0xff]
        %s382 = scalar_lea.vmem %s333, 16 [#allocation5]
        %v383 = vld [vmem:[%s382] sm:$0xff]
        %vm384 = vcmask 64512
        %v386 = vsel %vm384, %v377, 0
        %388 = vmatpush.msra.mxu0 0.0
        %389 = vmatpush.msra.mxu0 0.0
        %390 = vmatpush.msra.mxu0 0.0
        %391 = vmatpush.msra.mxu0 0.0
        %392 = vmatpush.msra.mxu0 0.0
        %393 = vmatpush.msra.mxu0 0.0
        %394 = vmatpush.msra.mxu0 0.0
        %395 = vmatpush.msra.mxu0 0.0
        %396 = vmatpush.msra.mxu0 0.0
        %397 = vmatpush.msra.mxu0 0.0
        %398 = vmatpush.msra.mxu0 0.0
        %399 = vmatpush.msra.mxu0 0.0
        %400 = vmatpush.msra.mxu0 0.0
        %401 = vmatpush.msra.mxu0 0.0
        %402 = vmatpush.msra.mxu0 0.0
        %403 = vmatpush.msra.mxu0 %v379
        %404 = vmatmul.f32.gmra.mxu0 %v386
        %v405 = vpop.f32.mrf.mxu0
        %v406 = vadd.f32 0.0, %v405
        %407 = vdwg.mxu0
        %408 = vmatpush.msra.mxu0 0.0
        %409 = vmatpush.msra.mxu0 0.0
        %410 = vmatpush.msra.mxu0 0.0
        %411 = vmatpush.msra.mxu0 0.0
        %412 = vmatpush.msra.mxu0 0.0
        %413 = vmatpush.msra.mxu0 0.0
        %414 = vmatpush.msra.mxu0 0.0
        %415 = vmatpush.msra.mxu0 0.0
        %416 = vmatpush.msra.mxu0 0.0
        %417 = vmatpush.msra.mxu0 0.0
        %418 = vmatpush.msra.mxu0 0.0
        %419 = vmatpush.msra.mxu0 0.0
        %420 = vmatpush.msra.mxu0 0.0
        %421 = vmatpush.msra.mxu0 0.0
        %422 = vmatpush.msra.mxu0 0.0
        %423 = vmatpush.msra.mxu0 %v381
        %424 = vmatmul.f32.gmra.mxu0 %v386
        %v425 = vpop.f32.mrf.mxu0
        %v426 = vadd.f32 0.0, %v425
        %427 = vdwg.mxu0
        %428 = vmatpush.msra.mxu0 0.0
        %429 = vmatpush.msra.mxu0 0.0
        %430 = vmatpush.msra.mxu0 0.0
        %431 = vmatpush.msra.mxu0 0.0
        %432 = vmatpush.msra.mxu0 0.0
        %433 = vmatpush.msra.mxu0 0.0
        %434 = vmatpush.msra.mxu0 0.0
        %435 = vmatpush.msra.mxu0 0.0
        %436 = vmatpush.msra.mxu0 0.0
        %437 = vmatpush.msra.mxu0 0.0
        %438 = vmatpush.msra.mxu0 0.0
        %439 = vmatpush.msra.mxu0 0.0
        %440 = vmatpush.msra.mxu0 0.0
        %441 = vmatpush.msra.mxu0 0.0
        %442 = vmatpush.msra.mxu0 0.0
        %443 = vmatpush.msra.mxu0 %v383
        %444 = vmatmul.f32.gmra.mxu0 %v386
        %v445 = vpop.f32.mrf.mxu0
        %v446 = vadd.f32 0.0, %v445
        %447 = vdwg.mxu0
        %v448 = vmul.f32 %v406, %v406
        %v449 = vmul.f32 %v426, %v426
        %v450 = vadd.f32 %v448, %v449
        %v451 = vmul.f32 %v446, %v446
        %v452 = vadd.f32 %v450, %v451
        %v453 = vmax.f32 %v452, 1e-08
        %v454 = vrsqrt.pop %v453
        %v455 = vmul.f32 %v454, %v453
        %v456 = vmul.f32 %v455, %v454
        %v457 = vmul.f32 0.5, %v456
        %v458 = vsub.f32 1.5, %v457
        %v459 = vmul.f32 %v454, %v458
        %v460 = vmul.f32 %v453, %v459
        %vm461 = vcmp.eq.f32.partialorder %v453, inf
        %v462 = vsel %vm461, %v453, %v460
        %vm463 = vcmp.eq.f32.partialorder %v453, 0.0
        %v464 = vand.u32 %v453, 2147483648
        %v465 = vsel %vm463, %v464, %v462
        %v466 = vld [vmem:[%s3] sm:$0xff]
        %v467 = vld [vmem:[%s3 + $0x8] sm:$0xff]
        %v468 = vld [vmem:[%s323] sm:$0xff]
        %v469 = vld [vmem:[%s323 + $0x8] sm:$0xff]
        %v470 = vld [vmem:[%s4] sm:$0xff]
        %v471 = vld [vmem:[%s4 + $0x8] sm:$0xff]
        %v473 = vsel %vm384, %v470, 0
        %v476 = vsel %vm384, %v471, 0
        %478 = vmatpush.msra.mxu0 0.0
        %479 = vmatpush.msra.mxu0 0.0
        %480 = vmatpush.msra.mxu0 0.0
        %481 = vmatpush.msra.mxu0 0.0
        %482 = vmatpush.msra.mxu0 0.0
        %483 = vmatpush.msra.mxu0 0.0
        %484 = vmatpush.msra.mxu0 0.0
        %485 = vmatpush.msra.mxu0 0.0
        %486 = vmatpush.msra.mxu0 0.0
        %487 = vmatpush.msra.mxu0 0.0
        %488 = vmatpush.msra.mxu0 0.0
        %489 = vmatpush.msra.mxu0 0.0
        %490 = vmatpush.msra.mxu0 0.0
        %491 = vmatpush.msra.mxu0 0.0
        %492 = vmatpush.msra.mxu0 0.0
        %493 = vmatpush.msra.mxu0 %v465
        %494 = vmatmul.f32.gmra.mxu0 %v473
        %v495 = vpop.f32.mrf.mxu0
        %v496 = vadd.f32 0.0, %v495
        %497 = vmatmul.f32.gmra.mxu0 %v476
        %v498 = vpop.f32.mrf.mxu0
        %v499 = vadd.f32 0.0, %v498
        %500 = vdwg.mxu0
        %vm501 = vcmask 130048
        %v503 = vsel %vm501, %v466, 0
        %v506 = vsel %vm501, %v467, 0
        %508 = vmatpush.msra.mxu0 0.0
        %509 = vmatpush.msra.mxu0 0.0
        %510 = vmatpush.msra.mxu0 0.0
        %511 = vmatpush.msra.mxu0 0.0
        %512 = vmatpush.msra.mxu0 0.0
        %513 = vmatpush.msra.mxu0 0.0
        %514 = vmatpush.msra.mxu0 0.0
        %515 = vmatpush.msra.mxu0 0.0
        %516 = vmatpush.msra.mxu0 0.0
        %517 = vmatpush.msra.mxu0 0.0
        %518 = vmatpush.msra.mxu0 0.0
        %519 = vmatpush.msra.mxu0 0.0
        %520 = vmatpush.msra.mxu0 0.0
        %521 = vmatpush.msra.mxu0 0.0
        %522 = vmatpush.msra.mxu0 %v469
        %523 = vmatpush.msra.mxu0 %v468
        %524 = vmatmul.f32.gmra.mxu0 %v503
        %v525 = vpop.f32.mrf.mxu0
        %v526 = vadd.f32 %v496, %v525
        %527 = vmatmul.f32.gmra.mxu0 %v506
        %v528 = vpop.f32.mrf.mxu0
        %v529 = vadd.f32 %v499, %v528
        %530 = vdwg.mxu0
        %v531 = vld [vmem:[%s5] sm:$0xff]
        %v532 = vld [vmem:[%s5 + $0x8] sm:$0xff]
        %534 = vset.pattern.permute.xlu0 0
        %535 = vperm.xlu0 %534, %v531
        %v536 = vpop.permute.xlu0 %535
        %539 = vset.pattern.permute.xlu0 0
        %540 = vperm.xlu0 %539, %v532
        %v541 = vpop.permute.xlu0 %540
        %v543 = vadd.f32 %v526, %v536
        %v544 = vadd.f32 %v529, %v541
        %v545 = vmax.f32 %v543, 0.0
        %v546 = vmax.f32 %v544, 0.0
        %547 = vst [vmem:[%s369] sm:$0xff] %v545
        %548 = vst [vmem:[%s369 + $0x8] sm:$0xff] %v546
        %v550 = vsel %vm384, %v378, 0
        %552 = vmatpush.msra.mxu0 0.0
        %553 = vmatpush.msra.mxu0 0.0
        %554 = vmatpush.msra.mxu0 0.0
        %555 = vmatpush.msra.mxu0 0.0
        %556 = vmatpush.msra.mxu0 0.0
        %557 = vmatpush.msra.mxu0 0.0
        %558 = vmatpush.msra.mxu0 0.0
        %559 = vmatpush.msra.mxu0 0.0
        %560 = vmatpush.msra.mxu0 0.0
        %561 = vmatpush.msra.mxu0 0.0
        %562 = vmatpush.msra.mxu0 0.0
        %563 = vmatpush.msra.mxu0 0.0
        %564 = vmatpush.msra.mxu0 0.0
        %565 = vmatpush.msra.mxu0 0.0
        %566 = vmatpush.msra.mxu0 0.0
        %567 = vmatpush.msra.mxu0 %v379
        %568 = vmatmul.f32.gmra.mxu0 %v550
        %v569 = vpop.f32.mrf.mxu0
        %v570 = vadd.f32 0.0, %v569
        %571 = vdwg.mxu0
        %572 = vmatpush.msra.mxu0 0.0
        %573 = vmatpush.msra.mxu0 0.0
        %574 = vmatpush.msra.mxu0 0.0
        %575 = vmatpush.msra.mxu0 0.0
        %576 = vmatpush.msra.mxu0 0.0
        %577 = vmatpush.msra.mxu0 0.0
        %578 = vmatpush.msra.mxu0 0.0
        %579 = vmatpush.msra.mxu0 0.0
        %580 = vmatpush.msra.mxu0 0.0
        %581 = vmatpush.msra.mxu0 0.0
        %582 = vmatpush.msra.mxu0 0.0
        %583 = vmatpush.msra.mxu0 0.0
        %584 = vmatpush.msra.mxu0 0.0
        %585 = vmatpush.msra.mxu0 0.0
        %586 = vmatpush.msra.mxu0 0.0
        %587 = vmatpush.msra.mxu0 %v381
        %588 = vmatmul.f32.gmra.mxu0 %v550
        %v589 = vpop.f32.mrf.mxu0
        %v590 = vadd.f32 0.0, %v589
        %591 = vdwg.mxu0
        %592 = vmatpush.msra.mxu0 0.0
        %593 = vmatpush.msra.mxu0 0.0
        %594 = vmatpush.msra.mxu0 0.0
        %595 = vmatpush.msra.mxu0 0.0
        %596 = vmatpush.msra.mxu0 0.0
        %597 = vmatpush.msra.mxu0 0.0
        %598 = vmatpush.msra.mxu0 0.0
        %599 = vmatpush.msra.mxu0 0.0
        %600 = vmatpush.msra.mxu0 0.0
        %601 = vmatpush.msra.mxu0 0.0
        %602 = vmatpush.msra.mxu0 0.0
        %603 = vmatpush.msra.mxu0 0.0
        %604 = vmatpush.msra.mxu0 0.0
        %605 = vmatpush.msra.mxu0 0.0
        %606 = vmatpush.msra.mxu0 0.0
        %607 = vmatpush.msra.mxu0 %v383
        %608 = vmatmul.f32.gmra.mxu0 %v550
        %v609 = vpop.f32.mrf.mxu0
        %v610 = vadd.f32 0.0, %v609
        %611 = vdwg.mxu0
        %v612 = vmul.f32 %v570, %v570
        %v613 = vmul.f32 %v590, %v590
        %v614 = vadd.f32 %v612, %v613
        %v615 = vmul.f32 %v610, %v610
        %v616 = vadd.f32 %v614, %v615
        %v617 = vmax.f32 %v616, 1e-08
        %v618 = vrsqrt.pop %v617
        %v619 = vmul.f32 %v618, %v617
        %v620 = vmul.f32 %v619, %v618
        %v621 = vmul.f32 0.5, %v620
        %v622 = vsub.f32 1.5, %v621
        %v623 = vmul.f32 %v618, %v622
        %v624 = vmul.f32 %v617, %v623
        %vm625 = vcmp.eq.f32.partialorder %v617, inf
        %v626 = vsel %vm625, %v617, %v624
        %vm627 = vcmp.eq.f32.partialorder %v617, 0.0
        %v628 = vand.u32 %v617, 2147483648
        %v629 = vsel %vm627, %v628, %v626
        %v630 = vxor.u32 %v629, 2147483648
        %v631 = vmul.f32 %v630, 1.442695
        %v632 = vpow.pop %v631
        %v633 = vadd.f32 %v632, 1.0
        %v634 = vrcp.pop %v633
        %v635 = vmul.f32 %v633, %v634
        %v636 = vsub.f32 1.0, %v635
        %v637 = vmul.f32 %v634, %v636
        %v638 = vadd.f32 %v634, %v637
        %vm639 = vweird.f32 %v633
        %vm640 = vweird.f32 %v634
        %vm641 = vmor %vm639, %vm640
        %v642 = vsel %vm641, %v634, %v638
        %v643 = vand.u32 2147483647, %v633
        %vm644 = vcmp.eq.f32.partialorder %v643, 8.507059e+37
        %v645 = vand.u32 %v633, 2147483648
        %v646 = vor.u32 1.1754944e-38, %v645
        %v647 = vsel %vm644, %v646, %v642
        %v648 = vmul.f32 1.0, %v647
        %v649 = vmul.f32 %v570, %v648
        %650 = vst [vmem:[%s376] sm:$0xff] %v649
        %v651 = vmul.f32 %v590, %v648
        %s652 = scalar_lea.vmem %s376, 8 [#allocation8]
        %653 = vst [vmem:[%s652] sm:$0xff] %v651
        %v654 = vmul.f32 %v610, %v648
        %s655 = scalar_lea.vmem %s376, 16 [#allocation8]
        %656 = vst [vmem:[%s655] sm:$0xff] %v654
        %s657 = sand.u32 %s197, 1
        %s658 = scalar_lea.sflag [#allocation4], %s657
        %s659 = sand.u32 %s197, 1
        %s660 = smul.addr %s659, 16
        %s661 = scalar_lea.vmem [#allocation7], %s660
        %s662 = sand.u32 %s223, 1
        %s663 = scalar_lea.sflag [#allocation9], %s662
        %s664 = sand.u32 %s223, 1
        %s665 = smul.addr %s664, 24
        %s666 = scalar_lea.vmem [#allocation8], %s665
        // Predicated region
        $region57: #{tpu_custom_call.1} parent=47 // pred_check
          %p667 = pneg %p207
        $region58: #{tpu_custom_call.1} parent=47 // pred_check_branch
          %669 = sbr.rel (%p667) target = $region60
        $region59: #{tpu_custom_call.1} parent=47 // pred_region
          %671 = vsyncadd %s658, 0
          %s672 = smul.addr %s32, 8
          %s673 = scalar_lea.hbm %s7, %s672
          %s674 = sshll.u32 %s661, 4
          %s675 = int_to_ptr.vmem [resolvable:$true] %s674
          %s676 = sshll.u32 %s673, 4
          %s677 = int_to_ptr.hbm [resolvable:$true] %s676
          %682 = dma.vmem_to_hbm [thread:$0]  %s675, 256, %s677, %s658, 128, 384, 8
        $region60: #{tpu_custom_call.1} parent=47 // pred_fallthru
          _
        // Predicated region
        $region61: #{tpu_custom_call.1} parent=47 // pred_check
          %p683 = pneg %p233
        $region62: #{tpu_custom_call.1} parent=47 // pred_check_branch
          %685 = sbr.rel (%p683) target = $region64
        $region63: #{tpu_custom_call.1} parent=47 // pred_region
          %687 = vsyncadd %s663, 0
          %s688 = smul.addr %s32, 8
          %s689 = scalar_lea.hbm %s8, %s688
          %s690 = sshll.u32 %s666, 4
          %s691 = int_to_ptr.vmem [resolvable:$true] %s690
          %s692 = sshll.u32 %s689, 4
          %s693 = int_to_ptr.hbm [resolvable:$true] %s692
          %698 = dma.vmem_to_hbm [thread:$0]  %s691, 384, %s693, %s663, 128, 384, 8
        $region64: #{tpu_custom_call.1} parent=47 // pred_fallthru
          _
      $region48: #{tpu_custom_call.1} parent=5 // pred_fallthru
        _
      %p699 = scmp.le.s32.totalorder 2, %s27
      // Predicated region
      $region65: #{tpu_custom_call.1} parent=5 // pred_check
        %p700 = pneg %p699
      $region66: #{tpu_custom_call.1} parent=5 // pred_check_branch
        %702 = sbr.rel (%p700) target = $region68
      $region67: #{tpu_custom_call.1} parent=5 // pred_region
        %s703 = ssub.s32 %s27, 2
        // Predicated region
        $region69: #{tpu_custom_call.1} parent=67 // pred_check
          %p704 = pneg %p213
        $region70: #{tpu_custom_call.1} parent=67 // pred_check_branch
          %706 = sbr.rel (%p704) target = $region72
        $region71: #{tpu_custom_call.1} parent=67 // pred_region
          %s707 = sand.u32 %s198, 1
          %s708 = scalar_lea.sflag [#allocation4], %s707
          %s709 = sand.u32 %s198, 1
          %s710 = smul.addr %s709, 16
          %s711 = scalar_lea.vmem [#allocation7], %s710
          %713 = dma.done %s708, 256
        $region72: #{tpu_custom_call.1} parent=67 // pred_fallthru
          _
        // Predicated region
        $region73: #{tpu_custom_call.1} parent=67 // pred_check
          %p714 = pneg %p239
        $region74: #{tpu_custom_call.1} parent=67 // pred_check_branch
          %716 = sbr.rel (%p714) target = $region76
        $region75: #{tpu_custom_call.1} parent=67 // pred_region
          %s717 = sand.u32 %s224, 1
          %s718 = scalar_lea.sflag [#allocation9], %s717
          %s719 = sand.u32 %s224, 1
          %s720 = smul.addr %s719, 24
          %s721 = scalar_lea.vmem [#allocation8], %s720
          %723 = dma.done %s718, 384
        $region76: #{tpu_custom_call.1} parent=67 // pred_fallthru
          _
      $region68: #{tpu_custom_call.1} parent=5 // pred_fallthru
        _
    $region6: #{tpu_custom_call.1} parent=1 // loop_footer
      %s31 = sadd.s32 1, %s27
    $region7: #{tpu_custom_call.1} parent=1 // loop_footer_branch
      %26 = sbr.rel target = $region3
    $region8: #{tpu_custom_call.1} parent=1 // loop_exit
      _
    %724 = vsyncpa [#allocation3], 1
    %s725 = scalar_lea.sflag [#allocation3], 1
    %726 = vsyncpa %s725, 1
    %727 = vsyncpa [#allocation6], 1
    %s728 = scalar_lea.sflag [#allocation6], 1
    %729 = vsyncpa %s728, 1
    %730 = vsyncpa [#allocation4], 1
    %s731 = scalar_lea.sflag [#allocation4], 1
    %732 = vsyncpa %s731, 1
    %733 = vsyncpa [#allocation9], 1
    %s734 = scalar_lea.sflag [#allocation9], 1
    %735 = vsyncpa %s734, 1

</llo_original>
